<compile_context>
chip_gen: v6e
topology: v6e:2x2x1
jax: 0.10.0
libtpu: 0.0.40
codegen_flags: <defaults>
</compile_context>

<pallas_src>
import jax
import jax.numpy as jnp
from jax.experimental import pallas as pl
from jax.experimental.pallas import tpu as pltpu


def _token_kernel(tok_ref, out_ref):
    # Identity "forward": emit the parameter. Single whole-ref load/store.
    out_ref[...] = tok_ref[...]


def token_forward(token: jax.Array) -> jax.Array:
    """Pallas equivalent of Token.forward(): returns the (1, 1, F) token."""
    assert token.ndim == 3 and token.shape[0] == 1 and token.shape[1] == 1
    f = token.shape[-1]

    # Squeeze to 2-D (1, F): only the last two dims matter for TPU layout and
    # this avoids a degenerate leading dim inside the kernel.
    tok2d = token.reshape(1, f)

    out2d = pl.pallas_call(
        _token_kernel,
        out_shape=jax.ShapeDtypeStruct((1, f), token.dtype),
        # Gridless: no grid loop, no double-buffering; whole (tiny) parameter
        # lives in VMEM for the duration of the call.
        in_specs=[pl.BlockSpec(memory_space=pltpu.MemorySpace.VMEM)],
        out_specs=pl.BlockSpec(memory_space=pltpu.MemorySpace.VMEM),
        # Alias output 0 onto input 0: no fresh HBM output allocation when the
        # input buffer is donatable.
        input_output_aliases={0: 0},
        # Tell XLA this custom call is negligible (identity on 2*F bytes).
        cost_estimate=pl.CostEstimate(
            flops=0,
            transcendentals=0,
            bytes_accessed=2 * f * token.dtype.itemsize,
        ),
    )(tok2d)

    # Restore the PyTorch-visible (1, 1, F) shape outside the kernel.
    return out2d.reshape(1, 1, f)


if __name__ == "__main__":
    # F chosen as a 128-lane multiple (lane-dense output, per the perf review);
    # typical transformer embedding dims (768, 1024, ...) satisfy this too.
    features_size = 128

    # Deterministic parameter init (stand-in for torch.randn).
    key = jax.random.PRNGKey(0)
    token_param = jax.random.normal(key, (1, 1, features_size), dtype=jnp.float32)

    out = token_forward(token_param)
    out = jax.block_until_ready(out)

    assert out.shape == (1, 1, features_size)
    assert out.dtype == jnp.float32
    assert bool(jnp.allclose(out, token_param))

    print("KERNEL_OK")
</pallas_src>

<mosaic_0001>
module attributes {stable_mosaic.version = 11 : i64} {
  func.func @_token_kernel(%arg0: memref<1x128xf32, #tpu.memory_space<vmem>>, %arg1: memref<1x128xf32, #tpu.memory_space<vmem>>) attributes {dimension_semantics = [], scalar_prefetch = 0 : i64, scratch_operands = 0 : i64, tpu.core_type = #tpu.core_type<tc>} {
    %c0 = arith.constant 0 : index
    %c0_0 = arith.constant 0 : index
    %0 = vector.load %arg0[%c0, %c0_0] : memref<1x128xf32, #tpu.memory_space<vmem>>, vector<1x128xf32>
    %c0_1 = arith.constant 0 : index
    %c0_2 = arith.constant 0 : index
    %1 = vector.load %arg1[%c0_1, %c0_2] : memref<1x128xf32, #tpu.memory_space<vmem>>, vector<1x128xf32>
    tpu.vector_store %arg1[%c0_1, %c0_2], %0 {strides = array<i32>} : memref<1x128xf32, #tpu.memory_space<vmem>>, vector<1x128xf32>,
    return
  }
}

</mosaic_0001>

<llo_original>
// kernel: tpu_custom_call.1
$region0: #{tpu_custom_call.1}
  #allocation0 [shape = 'u32[]', space=smem, size = 0x4, offset = 0x4, fixed_abs, tag = 'smem constant byte address 0x4 - core index']
  #allocation1 [shape = 'u32[144,128]{1,0:T(1,128)}', space=vmem, size = 0x12000, scoped, tag = 'internal scratch']
  %s0 = inlined_call_operand.hbm [shape: f32[1,128], index: 0, kind: input, shape index: {}, may-alias: {0,1}]
  %s1 = inlined_call_operand.hbm [shape: f32[1,128], index: 1, kind: output, shape index: {}, may-alias: {0,1}]
  %s2 = sld [smem:[#allocation0]]
  $region18: #{tpu_custom_call.1} parent=0
    _
  %s4 = ssub.s32 1, %s2
  %s5 = scalar_select 0, %s4, %s2
  $region1: #{tpu_custom_call.1} parent=0
    #allocation2 [shape = 'u8[512]{0}', space=vmem, size = 0x400, scoped, tag = 'input window, operand 0, single buffered']
    #allocation3 [shape = 's32[1]{0}', space=sflag, size = 0x4, scoped, tag = 'scoped memory for tpu_custom_call.1']
    #allocation4 [shape = 's32[1]{0}', space=sflag, size = 0x4, scoped, tag = 'scoped memory for tpu_custom_call.1']
    #allocation5 [shape = 'u8[512]{0}', space=vmem, size = 0x400, scoped, tag = 'output window, operand 0, single buffered']
    %6 = vsyncpa [#allocation3], 0
    %7 = vsyncpa [#allocation4], 0
    // Predicated region
    $region2: #{tpu_custom_call.1} parent=1 // pred_check
      _
    $region3: #{tpu_custom_call.1} parent=1 // pred_check_branch
      %9 = sbr.rel (0) target = $region5
    $region4: #{tpu_custom_call.1} parent=1 // pred_region
      %s11 = ssub.s32 16, 16
      %12 = vsyncadd [#allocation3], %s11
      %s14 = sshll.u32 [#allocation2], 4
      %s15 = int_to_ptr.vmem [resolvable:$true] %s14
      %17 = dma.hbm_to_vmem [thread:$0]  %s0, 16, %s15, [#allocation3]
    $region5: #{tpu_custom_call.1} parent=1 // pred_fallthru
      _
    // Predicated region
    $region6: #{tpu_custom_call.1} parent=1 // pred_check
      _
    $region7: #{tpu_custom_call.1} parent=1 // pred_check_branch
      %19 = sbr.rel (0) target = $region9
    $region8: #{tpu_custom_call.1} parent=1 // pred_region
      %20 = dma.done [#allocation3], 16
    $region9: #{tpu_custom_call.1} parent=1 // pred_fallthru
      _
    %v21 = vld [vmem:[#allocation2] sm:$0x1]
    %22 = vst [vmem:[#allocation5] sm:$0x1] %v21
    // Predicated region
    $region10: #{tpu_custom_call.1} parent=1 // pred_check
      _
    $region11: #{tpu_custom_call.1} parent=1 // pred_check_branch
      %24 = sbr.rel (0) target = $region13
    $region12: #{tpu_custom_call.1} parent=1 // pred_region
      %s26 = ssub.s32 16, 16
      %27 = vsyncadd [#allocation4], %s26
      %s29 = sshll.u32 [#allocation5], 4
      %s30 = int_to_ptr.vmem [resolvable:$true] %s29
      %32 = dma.vmem_to_hbm [thread:$0]  %s30, 16, %s1, [#allocation4]
    $region13: #{tpu_custom_call.1} parent=1 // pred_fallthru
      _
    // Predicated region
    $region14: #{tpu_custom_call.1} parent=1 // pred_check
      _
    $region15: #{tpu_custom_call.1} parent=1 // pred_check_branch
      %34 = sbr.rel (0) target = $region17
    $region16: #{tpu_custom_call.1} parent=1 // pred_region
      %35 = dma.done [#allocation4], 16
    $region17: #{tpu_custom_call.1} parent=1 // pred_fallthru
      _
    %36 = vsyncpa [#allocation3], 1
    %37 = vsyncpa [#allocation4], 1

</llo_original>
